<compile_context>
chip_gen: v7x
topology: tpu7x:2x2x1
jax: 0.10.0
libtpu: 0.0.40
codegen_flags: <defaults>
</compile_context>

<pallas_src>
import jax
import jax.numpy as jnp
from jax.experimental import pallas as pl
from jax.experimental.pallas import tpu as pltpu

_LANE_CANDIDATES = (4096, 2048, 1024, 512, 256, 128)


def _norm_kernel(params_ref, x_ref, o_ref):
    # params_ref lives in SMEM: [mean, 1/std] as f32 scalars.
    mean = params_ref[0]
    inv_std = params_ref[1]
    # Compute in f32 (scalar promotes), cast back to the output dtype on store.
    o_ref[...] = ((x_ref[...] - mean) * inv_std).astype(o_ref.dtype)


def _vmem_budget():
    """(vmem_limit_bytes, per-buffer block cap) derived from the chip's VMEM."""
    try:
        phys = int(getattr(pltpu.get_tpu_info(), "vmem_capacity_bytes",
                           64 * 1024 * 1024))
    except Exception:
        phys = 64 * 1024 * 1024  # conservative fallback: v7x per-TC VMEM
    # Leave ~3/8 of physical VMEM as compiler headroom, cap at 64 MiB.
    vmem_limit = min(64 * 1024 * 1024, (phys * 5) // 8)
    # in + out, double-buffered = 4x block; keep that well under the limit.
    block_cap = min(8 * 1024 * 1024, vmem_limit // 6)
    return vmem_limit, block_cap


def _num_tensorcores():
    try:
        info = pltpu.get_tpu_info()
        for name in ("num_tensorcores", "tensorcores_per_chip", "num_cores",
                     "num_cores_per_chip", "core_count"):
            v = getattr(info, name, None)
            if isinstance(v, int) and v > 0:
                return v
    except Exception:
        pass
    return 1


def _dim_semantics(num_steps):
    n_cores = _num_tensorcores()
    if n_cores > 1 and num_steps >= n_cores and num_steps % n_cores == 0:
        # v7x: genuinely shard the grid across both TensorCores.
        return (pltpu.CORE_PARALLEL,)
    return ("parallel",)


def _choose_block_rows(rows, lane, itemsize, block_cap_bytes):
    """Largest row-block under the VMEM budget, but keep >=2/4 grid steps for
    mid-size tensors (pipelining + two-TC sharding)."""
    sub = {4: 8, 2: 16, 1: 32}.get(itemsize, 8)  # native sublane multiple
    row_bytes = lane * itemsize
    total_bytes = rows * row_bytes
    cap_rows = max(sub, (block_cap_bytes // row_bytes) // sub * sub)
    if total_bytes >= 2 * 1024 * 1024:
        min_steps = 4
    elif total_bytes >= 512 * 1024:
        min_steps = 2
    else:
        min_steps = 1
    if min_steps > 1:
        cap_rows = min(cap_rows,
                       max(sub, pl.cdiv(pl.cdiv(rows, min_steps), sub) * sub))
    if rows <= cap_rows:
        return rows  # block == full array dims
    for cand in range(cap_rows, 0, -sub):
        if rows % cand == 0:
            return cand  # exact grid, fully unmasked loads/stores
    # No nice divisor: non-dividing block; last block is masked (safe because
    # the op is purely elementwise, nothing reads the padding).
    return cap_rows


def _run_norm_2d(x2d, params):
    rows, lane = x2d.shape
    itemsize = x2d.dtype.itemsize
    vmem_limit, block_cap = _vmem_budget()
    block_rows = _choose_block_rows(rows, lane, itemsize, block_cap)
    num_steps = pl.cdiv(rows, block_rows)
    n = rows * lane
    return pl.pallas_call(
        _norm_kernel,
        out_shape=jax.ShapeDtypeStruct((rows, lane), x2d.dtype),
        grid=(num_steps,),
        in_specs=[
            pl.BlockSpec(memory_space=pltpu.MemorySpace.SMEM),  # [mean, 1/std]
            pl.BlockSpec((block_rows, lane), lambda i: (i, 0)),
        ],
        out_specs=pl.BlockSpec((block_rows, lane), lambda i: (i, 0)),
        compiler_params=pltpu.CompilerParams(
            dimension_semantics=_dim_semantics(num_steps),
            vmem_limit_bytes=vmem_limit,
        ),
        cost_estimate=pl.CostEstimate(
            flops=2 * n, transcendentals=0, bytes_accessed=2 * n * itemsize),
    )(params, x2d)


def norm_layer_forward(x, mean, std):
    """Pallas equivalent of norm_layer.forward: (x - mean) / std."""
    orig_shape = x.shape
    n = x.size
    if n == 0:
        return x

    # Runtime scalars (jit/trace safe, no recompiles per distinct mean/std).
    params = jnp.stack([
        jnp.asarray(mean, dtype=jnp.float32).reshape(()),
        (1.0 / jnp.asarray(std, dtype=jnp.float32)).reshape(()),
    ])

    # Widest lane dim (multiple of 128) that divides the element count, so we
    # can reshape in place with no padding and no extra HBM copies.
    lane = next((c for c in _LANE_CANDIDATES if n % c == 0), None)
    if lane is not None:
        out2d = _run_norm_2d(x.reshape(n // lane, lane), params)
        return out2d.reshape(orig_shape)

    # Ragged: run the kernel on the aligned prefix; handle the <128-element
    # tail with a tiny jnp expression (no full-tensor pad/slice round trip).
    flat = x.reshape(-1)
    n_main = (n // 128) * 128
    tail = flat[n_main:]
    tail_out = ((tail.astype(jnp.float32) - params[0]) * params[1]).astype(x.dtype)
    if n_main == 0:
        return tail_out.reshape(orig_shape)
    lane = next(c for c in _LANE_CANDIDATES if n_main % c == 0)
    main_out = _run_norm_2d(flat[:n_main].reshape(n_main // lane, lane),
                            params).reshape(-1)
    return jnp.concatenate([main_out, tail_out]).reshape(orig_shape)


if __name__ == "__main__":
    key = jax.random.PRNGKey(0)
    # Known mean/std, as the module would receive in __init__.
    mean, std = 1.5, 3.0

    # NCHW input, small shapes (batch=2, channels=4, spatial=16x16).
    x = jax.random.normal(key, (2, 4, 16, 16), dtype=jnp.float32) * 3.0 + 1.5
    out = jax.block_until_ready(norm_layer_forward(x, mean, std))
    ref = (x - mean) / std
    assert out.shape == x.shape
    assert out.dtype == x.dtype
    assert jnp.allclose(out, ref, atol=1e-6, rtol=1e-5)

    # Ragged element count (not a multiple of 128) exercises the prefix+tail path.
    x2 = jax.random.normal(jax.random.PRNGKey(1), (2, 3, 15, 15),
                           dtype=jnp.float32) * 3.0 + 1.5
    out2 = jax.block_until_ready(norm_layer_forward(x2, mean, std))
    ref2 = (x2 - mean) / std
    assert out2.shape == x2.shape
    assert jnp.allclose(out2, ref2, atol=1e-6, rtol=1e-5)

    print("KERNEL_OK")
</pallas_src>

<mosaic_0001>
module attributes {stable_mosaic.version = 11 : i64} {
  func.func @_norm_kernel(%arg0: i32, %arg1: memref<2xf32, #tpu.memory_space<smem>>, %arg2: memref<1x2048xf32, #tpu.memory_space<vmem>>, %arg3: memref<1x2048xf32, #tpu.memory_space<vmem>>) attributes {dimension_semantics = [#tpu.dimension_semantics<parallel>], iteration_bounds = array<i64: 1>, scalar_prefetch = 0 : i64, scratch_operands = 0 : i64, tpu.core_type = #tpu.core_type<tc>, window_params = [{transform_indices = @transform_0, window_bounds = array<i64: 2>}, {transform_indices = @transform_1, window_bounds = array<i64: 1, 2048>}, {transform_indices = @transform_2, window_bounds = array<i64: 1, 2048>}]} {
    %c0 = arith.constant 0 : index
    %0 = memref.load %arg1[%c0] : memref<2xf32, #tpu.memory_space<smem>>
    %c1 = arith.constant 1 : index
    %1 = memref.load %arg1[%c1] : memref<2xf32, #tpu.memory_space<smem>>
    %c0_0 = arith.constant 0 : index
    %c0_1 = arith.constant 0 : index
    %2 = vector.load %arg2[%c0_0, %c0_1] : memref<1x2048xf32, #tpu.memory_space<vmem>>, vector<1x2048xf32>
    %3 = vector.broadcast %0 : f32 to vector<1x2048xf32>
    %4 = arith.subf %2, %3 : vector<1x2048xf32>
    %5 = vector.broadcast %1 : f32 to vector<1x2048xf32>
    %6 = arith.mulf %4, %5 : vector<1x2048xf32>
    %c0_2 = arith.constant 0 : index
    %c0_3 = arith.constant 0 : index
    %7 = vector.load %arg3[%c0_2, %c0_3] : memref<1x2048xf32, #tpu.memory_space<vmem>>, vector<1x2048xf32>
    tpu.vector_store %arg3[%c0_2, %c0_3], %6 {strides = array<i32>} : memref<1x2048xf32, #tpu.memory_space<vmem>>, vector<1x2048xf32>,
    return
  }
  func.func @transform_0(%arg0: i32) -> i32 {
    %c0_i32 = arith.constant 0 : i32
    %c0_i32_0 = arith.constant 0 : i32
    return %c0_i32 : i32
  }
  func.func @transform_1(%arg0: i32) -> (i32, i32) {
    %c0_i32 = arith.constant 0 : i32
    %c0_i32_0 = arith.constant 0 : i32
    return %arg0, %c0_i32 : i32, i32
  }
  func.func @transform_2(%arg0: i32) -> (i32, i32) {
    %c0_i32 = arith.constant 0 : i32
    %c0_i32_0 = arith.constant 0 : i32
    return %arg0, %c0_i32 : i32, i32
  }
}

</mosaic_0001>

<llo_original>
// kernel: tpu_custom_call.1
$region0: #{tpu_custom_call.1}
  #allocation0 [shape = 'u32[]', space=smem, size = 0x4, offset = 0x4, fixed_abs, tag = 'smem constant byte address 0x4 - core index']
  #allocation1 [shape = 'u32[144,128]{1,0:T(1,128)}', space=vmem, size = 0x12000, scoped, tag = 'internal scratch']
  %s0 = inlined_call_operand.hbm [shape: f32[2], index: 0, kind: input, shape index: {}]
  %s1 = inlined_call_operand.hbm [shape: f32[1,2048], index: 1, kind: input, shape index: {}]
  %s2 = inlined_call_operand.hbm [shape: f32[1,2048], index: 2, kind: output, shape index: {}]
  %s3 = sld [smem:[#allocation0]]
  $region26: #{tpu_custom_call.1} parent=0
    _
  %s5 = ssub.s32 1, %s3
  %s6 = scalar_select 0, %s5, %s3
  $region1: #{tpu_custom_call.1} parent=0
    #allocation2 [shape = 'u8[512]{0}', space=smem, size = 0x200, scoped, tag = 'input window, operand 0, single buffered']
    #allocation3 [shape = 's32[1]{0}', space=sflag, size = 0x4, scoped, tag = 'scoped memory for tpu_custom_call.1']
    #allocation4 [shape = 's32[1]{0}', space=sflag, size = 0x4, scoped, tag = 'scoped memory for tpu_custom_call.1']
    #allocation5 [shape = 's32[1]{0}', space=sflag, size = 0x4, scoped, tag = 'scoped memory for tpu_custom_call.1']
    #allocation6 [shape = 'u8[8192]{0}', space=vmem, size = 0x2000, scoped, tag = 'input window, operand 1, single buffered']
    #allocation7 [shape = 'u8[8192]{0}', space=vmem, size = 0x2000, scoped, tag = 'output window, operand 0, single buffered']
    %7 = vsyncpa [#allocation5], 0
    %8 = vsyncpa [#allocation3], 0
    %9 = vsyncpa [#allocation4], 0
    // Predicated region
    $region2: #{tpu_custom_call.1} parent=1 // pred_check
      _
    $region3: #{tpu_custom_call.1} parent=1 // pred_check_branch
      %11 = sbr.rel (0) target = $region5
    $region4: #{tpu_custom_call.1} parent=1 // pred_region
      %s13 = ssub.s32 16, 16
      %14 = vsyncadd [#allocation5], %s13
      %17 = dma.hbm_to_smem %s0, 16, [#allocation2], [#allocation5]
    $region5: #{tpu_custom_call.1} parent=1 // pred_fallthru
      _
    // Predicated region
    $region6: #{tpu_custom_call.1} parent=1 // pred_check
      _
    $region7: #{tpu_custom_call.1} parent=1 // pred_check_branch
      %19 = sbr.rel (0) target = $region9
    $region8: #{tpu_custom_call.1} parent=1 // pred_region
      %s21 = ssub.s32 256, 256
      %22 = vsyncadd [#allocation3], %s21
      %s24 = sshll.u32 [#allocation6], 4
      %s25 = int_to_ptr.vmem [resolvable:$true] %s24
      %27 = dma.hbm_to_vmem [thread:$0]  %s1, 256, %s25, [#allocation3]
    $region9: #{tpu_custom_call.1} parent=1 // pred_fallthru
      _
    // Predicated region
    $region10: #{tpu_custom_call.1} parent=1 // pred_check
      _
    $region11: #{tpu_custom_call.1} parent=1 // pred_check_branch
      %29 = sbr.rel (0) target = $region13
    $region12: #{tpu_custom_call.1} parent=1 // pred_region
      %30 = dma.done [#allocation5], 16
    $region13: #{tpu_custom_call.1} parent=1 // pred_fallthru
      _
    // Predicated region
    $region14: #{tpu_custom_call.1} parent=1 // pred_check
      _
    $region15: #{tpu_custom_call.1} parent=1 // pred_check_branch
      %32 = sbr.rel (0) target = $region17
    $region16: #{tpu_custom_call.1} parent=1 // pred_region
      %33 = dma.done [#allocation3], 256
    $region17: #{tpu_custom_call.1} parent=1 // pred_fallthru
      _
    %34 = sfence
    %s35 = sld [smem:[#allocation2]]
    %s36 = sld [smem:[#allocation2 + $0x1]]
    %v37 = vld [vmem:[#allocation6] sm:$0xff]
    %v38 = vld [vmem:[#allocation6 + $0x8] sm:$0xff]
    %v39 = vstv %s35
    %v40 = vsub.f32 %v37, %v39
    %v41 = vsub.f32 %v38, %v39
    %v42 = vstv %s36
    %v43 = vmul.f32 %v40, %v42
    %v44 = vmul.f32 %v41, %v42
    %45 = vst [vmem:[#allocation7] sm:$0xff] %v43
    %46 = vst [vmem:[#allocation7 + $0x8] sm:$0xff] %v44
    // Predicated region
    $region18: #{tpu_custom_call.1} parent=1 // pred_check
      _
    $region19: #{tpu_custom_call.1} parent=1 // pred_check_branch
      %48 = sbr.rel (0) target = $region21
    $region20: #{tpu_custom_call.1} parent=1 // pred_region
      %s50 = ssub.s32 256, 256
      %51 = vsyncadd [#allocation4], %s50
      %s53 = sshll.u32 [#allocation7], 4
      %s54 = int_to_ptr.vmem [resolvable:$true] %s53
      %56 = dma.vmem_to_hbm [thread:$0]  %s54, 256, %s2, [#allocation4]
    $region21: #{tpu_custom_call.1} parent=1 // pred_fallthru
      _
    // Predicated region
    $region22: #{tpu_custom_call.1} parent=1 // pred_check
      _
    $region23: #{tpu_custom_call.1} parent=1 // pred_check_branch
      %58 = sbr.rel (0) target = $region25
    $region24: #{tpu_custom_call.1} parent=1 // pred_region
      %59 = dma.done [#allocation4], 256
    $region25: #{tpu_custom_call.1} parent=1 // pred_fallthru
      _
    %60 = vsyncpa [#allocation3], 1
    %61 = vsyncpa [#allocation4], 1
    %62 = vsyncpa [#allocation5], 1

</llo_original>
